<compile_context>
chip_gen: v5e
topology: v5e:2x2
jax: 0.10.0
libtpu: 0.0.40
codegen_flags: <defaults>
</compile_context>

<pallas_src>
import math
import functools

import jax
import jax.numpy as jnp
from jax.experimental import pallas as pl
from jax.experimental.pallas import tpu as pltpu


def _round_up(x, m):
    return ((x + m - 1) // m) * m


# ----------------------------------------------------------------------------
# Kernel: per-row-tile embedding lookup via VPU select-accumulate.
#   types_ref: [tn, 1]  int32   (class index per token, 0 = padding class)
#   w_ref:     [num_classes, dim] f32  (pre-folded effective weight)
#   out_ref:   [tn, dim] f32
# ----------------------------------------------------------------------------
def _embed_kernel(types_ref, w_ref, out_ref, *, num_classes):
    types = types_ref[...]                       # [tn, 1] int32
    w = w_ref[...]                               # [num_classes, dim] f32
    # Class 0 seeds the accumulator (saves one add); num_classes is 7-9 so the
    # static unroll is tiny and fully visible to the LLO scheduler.
    acc = jnp.where(types == 0, w[0:1, :], 0.0)  # [tn, dim]
    for c in range(1, num_classes):
        acc = acc + jnp.where(types == c, w[c:c + 1, :], 0.0)
    out_ref[...] = acc


# ----------------------------------------------------------------------------
# Wrapper (jitted): Sinkhorn + fold in plain jnp, one pallas_call over a
# parallel row-tile grid.
# ----------------------------------------------------------------------------
@functools.partial(jax.jit, static_argnums=(0, 4, 5, 6))
def _coupled_embedding_fwd(process_idx, event_types, coupling, w_emb,
                           n_iter, tau, tile_n):
    B, S = event_types.shape
    K1, K0 = coupling.shape
    dim = w_emb.shape[0]
    N = B * S

    # --- Sinkhorn + coupling->weight fold (hoisted out of the kernel) -------
    w_t = jnp.transpose(w_emb)                                   # [K0+1, dim]
    if process_idx == 0:
        # Sinkhorn result is dead on this path (matches original semantics).
        w_eff = w_t
        num_classes = K0 + 1
    else:
        la = -coupling * (1.0 / tau)                             # [K1, K0]
        for _ in range(n_iter):
            la = la - jax.scipy.special.logsumexp(la, axis=-1, keepdims=True)
            la = la - jax.scipy.special.logsumexp(la, axis=-2, keepdims=True)
        trans = jnp.exp(la)                                      # [K1, K0]
        # out = [onehot[:, :1], onehot[:, 1:] @ trans] @ W_t
        #     = onehot @ concat([W_t[0:1], trans @ W_t[1:]], axis=0)
        w_eff = jnp.concatenate([w_t[:1], trans @ w_t[1:]], axis=0)  # [K1+1, dim]
        num_classes = K1 + 1

    # --- Row-tile selection: minimal padding, few steps, >=2 tiles when
    #     there is enough work (v7x megacore). -------------------------------
    n_tiles = max(1, -(-N // tile_n))
    if n_tiles == 1 and N >= 512:
        n_tiles = 2
    tn = _round_up(-(-N // n_tiles), 8)
    n_pad = tn * n_tiles

    # Pad with type 0 (the padding class -- always a valid row of w_eff);
    # padded rows are sliced off below.
    types_flat = event_types.reshape(N).astype(jnp.int32)
    if n_pad != N:
        types_flat = jnp.pad(types_flat, (0, n_pad - N))
    types_flat = types_flat.reshape(n_pad, 1)

    cost = pl.CostEstimate(
        flops=2 * n_pad * dim * num_classes,
        transcendentals=0,
        bytes_accessed=n_pad * (4 * dim + 4) + num_classes * dim * 4)

    out_pad = pl.pallas_call(
        functools.partial(_embed_kernel, num_classes=num_classes),
        out_shape=jax.ShapeDtypeStruct((n_pad, dim), jnp.float32),
        grid=(n_tiles,),
        in_specs=[pl.BlockSpec((tn, 1), lambda i: (i, 0)),
                  pl.BlockSpec((num_classes, dim), lambda i: (0, 0))],
        out_specs=pl.BlockSpec((tn, dim), lambda i: (i, 0)),
        compiler_params=pltpu.CompilerParams(
            dimension_semantics=("parallel",)),
        cost_estimate=cost,
    )(types_flat, w_eff)

    return out_pad[:N].reshape(B, S, dim)


def coupled_embedding_forward(process_idx, event_types, coupling, w_emb,
                              n_iter=20, tau=0.1, tile_n=4096):
    """Pallas port of CoupledEmbedding.forward.

    event_types: [B, S] int32 (0 = padding type)
    coupling:    [num_types[1], num_types[0]] float32
    w_emb:       [dim, num_types[0] + 1] float32 (nn.Linear weight, [out, in])
    returns:     [B, S, dim] float32
    """
    if process_idx not in (0, 1):
        raise ValueError("process_idx must be 0 or 1")
    return _coupled_embedding_fwd(process_idx, event_types, coupling, w_emb,
                                  int(n_iter), float(tau), int(tile_n))


# ----------------------------------------------------------------------------
# Pure-JAX reference (mirrors the PyTorch forward) for a correctness check.
# ----------------------------------------------------------------------------
def reference_forward(process_idx, event_types, coupling, w_emb, n_iter=20,
                      tau=0.1):
    la = -coupling / tau
    for _ in range(n_iter):
        la = la - jax.scipy.special.logsumexp(la, axis=-1, keepdims=True)
        la = la - jax.scipy.special.logsumexp(la, axis=-2, keepdims=True)
    trans = jnp.exp(la)
    K1, K0 = coupling.shape
    nc = (K0 if process_idx == 0 else K1) + 1
    onehot = jax.nn.one_hot(event_types, nc, dtype=jnp.float32)
    if process_idx == 0:
        aligned = onehot
    else:
        aligned = jnp.concatenate(
            [onehot[..., :1], onehot[..., 1:] @ trans], axis=-1)
    return aligned @ w_emb.T


if __name__ == "__main__":
    # Module hyperparameters (small, consistent with the forward pass; dim is
    # a multiple of 128 so output stores are lane-dense -- SAHP default is 256).
    num_types = [6, 8]      # num_types[0]=6 source types, num_types[1]=8 target
    dim = 128
    n_iter = 20
    B, S = 2, 8

    key = jax.random.PRNGKey(0)
    k_coupling, k_w, k_t0, k_t1, k_t2, k_t3 = jax.random.split(key, 6)

    # Deterministic parameter init (shapes from __init__):
    #   coupling: [num_types[1], num_types[0]] ~ randn
    #   src_emb.weight: [dim, num_types[0] + 1]
    coupling = jax.random.normal(
        k_coupling, (num_types[1], num_types[0]), dtype=jnp.float32)
    bound = 1.0 / math.sqrt(num_types[0] + 1)
    w_emb = jax.random.uniform(
        k_w, (dim, num_types[0] + 1), minval=-bound, maxval=bound,
        dtype=jnp.float32)

    # Example inputs: event_types in [0, num_types[p]] (0 = padding).
    ev0 = jax.random.randint(k_t0, (B, S), 0, num_types[0] + 1,
                             dtype=jnp.int32)
    ev1 = jax.random.randint(k_t1, (B, S), 0, num_types[1] + 1,
                             dtype=jnp.int32)
    # A shape whose token count needs padding (exercises the pad path).
    ev2 = jax.random.randint(k_t2, (3, 5), 0, num_types[1] + 1,
                             dtype=jnp.int32)
    # A larger shape that exercises the multi-tile ("parallel") grid path.
    ev3 = jax.random.randint(k_t3, (8, 100), 0, num_types[1] + 1,
                             dtype=jnp.int32)

    out0 = coupled_embedding_forward(0, ev0, coupling, w_emb, n_iter=n_iter)
    out1 = coupled_embedding_forward(1, ev1, coupling, w_emb, n_iter=n_iter)
    out2 = coupled_embedding_forward(1, ev2, coupling, w_emb, n_iter=n_iter)
    out3 = coupled_embedding_forward(1, ev3, coupling, w_emb, n_iter=n_iter)
    jax.block_until_ready(out0)
    jax.block_until_ready(out1)
    jax.block_until_ready(out2)
    jax.block_until_ready(out3)

    ref0 = reference_forward(0, ev0, coupling, w_emb, n_iter=n_iter)
    ref1 = reference_forward(1, ev1, coupling, w_emb, n_iter=n_iter)
    ref2 = reference_forward(1, ev2, coupling, w_emb, n_iter=n_iter)
    ref3 = reference_forward(1, ev3, coupling, w_emb, n_iter=n_iter)

    assert out0.shape == (B, S, dim) and out1.shape == (B, S, dim)
    assert out2.shape == (3, 5, dim) and out3.shape == (8, 100, dim)
    assert jnp.allclose(out0, ref0, atol=1e-5, rtol=1e-5)
    assert jnp.allclose(out1, ref1, atol=1e-5, rtol=1e-5)
    assert jnp.allclose(out2, ref2, atol=1e-5, rtol=1e-5)
    assert jnp.allclose(out3, ref3, atol=1e-5, rtol=1e-5)

    print("KERNEL_OK")
</pallas_src>

<mosaic_0001>
module attributes {stable_mosaic.version = 11 : i64} {
  func.func @_embed_kernel(%arg0: i32, %arg1: memref<16x1xi32, #tpu.memory_space<vmem>>, %arg2: memref<7x128xf32, #tpu.memory_space<vmem>>, %arg3: memref<16x128xf32, #tpu.memory_space<vmem>>) attributes {dimension_semantics = [#tpu.dimension_semantics<parallel>], iteration_bounds = array<i64: 1>, scalar_prefetch = 0 : i64, scratch_operands = 0 : i64, tpu.core_type = #tpu.core_type<tc>, window_params = [{transform_indices = @transform_0, window_bounds = array<i64: 16, 1>}, {pipeline_mode = #tpu.pipeline_mode<synchronous>, transform_indices = @transform_1, window_bounds = array<i64: 7, 128>}, {transform_indices = @transform_2, window_bounds = array<i64: 16, 128>}]} {
    %c0 = arith.constant 0 : index
    %c0_0 = arith.constant 0 : index
    %0 = vector.load %arg1[%c0, %c0_0] : memref<16x1xi32, #tpu.memory_space<vmem>>, vector<16x1xi32>
    %c0_1 = arith.constant 0 : index
    %c0_2 = arith.constant 0 : index
    %1 = vector.load %arg2[%c0_1, %c0_2] : memref<7x128xf32, #tpu.memory_space<vmem>>, vector<7x128xf32>
    %c0_i32 = arith.constant 0 : i32
    %2 = vector.broadcast %c0_i32 : i32 to vector<16x1xi32>
    %3 = arith.cmpi eq, %0, %2 : vector<16x1xi32>
    %4 = vector.extract_strided_slice %1 {offsets = [0, 0], sizes = [1, 128], strides = [1, 1]} : vector<7x128xf32> to vector<1x128xf32>
    %cst = arith.constant 0.000000e+00 : f32
    %5 = vector.shape_cast %3 : vector<16x1xi1> to vector<16x1xi1>
    %6 = vector.broadcast %5 : vector<16x1xi1> to vector<16x128xi1>
    %7 = vector.shape_cast %4 : vector<1x128xf32> to vector<1x128xf32>
    %8 = vector.broadcast %7 : vector<1x128xf32> to vector<16x128xf32>
    %9 = vector.broadcast %cst : f32 to vector<16x128xf32>
    %10 = arith.select %6, %8, %9 : vector<16x128xi1>, vector<16x128xf32>
    %c1_i32 = arith.constant 1 : i32
    %11 = vector.broadcast %c1_i32 : i32 to vector<16x1xi32>
    %12 = arith.cmpi eq, %0, %11 : vector<16x1xi32>
    %13 = vector.extract_strided_slice %1 {offsets = [1, 0], sizes = [1, 128], strides = [1, 1]} : vector<7x128xf32> to vector<1x128xf32>
    %cst_3 = arith.constant 0.000000e+00 : f32
    %14 = vector.shape_cast %12 : vector<16x1xi1> to vector<16x1xi1>
    %15 = vector.broadcast %14 : vector<16x1xi1> to vector<16x128xi1>
    %16 = vector.shape_cast %13 : vector<1x128xf32> to vector<1x128xf32>
    %17 = vector.broadcast %16 : vector<1x128xf32> to vector<16x128xf32>
    %18 = vector.broadcast %cst_3 : f32 to vector<16x128xf32>
    %19 = arith.select %15, %17, %18 : vector<16x128xi1>, vector<16x128xf32>
    %20 = arith.addf %10, %19 : vector<16x128xf32>
    %c2_i32 = arith.constant 2 : i32
    %21 = vector.broadcast %c2_i32 : i32 to vector<16x1xi32>
    %22 = arith.cmpi eq, %0, %21 : vector<16x1xi32>
    %23 = vector.extract_strided_slice %1 {offsets = [2, 0], sizes = [1, 128], strides = [1, 1]} : vector<7x128xf32> to vector<1x128xf32>
    %cst_4 = arith.constant 0.000000e+00 : f32
    %24 = vector.shape_cast %22 : vector<16x1xi1> to vector<16x1xi1>
    %25 = vector.broadcast %24 : vector<16x1xi1> to vector<16x128xi1>
    %26 = vector.shape_cast %23 : vector<1x128xf32> to vector<1x128xf32>
    %27 = vector.broadcast %26 : vector<1x128xf32> to vector<16x128xf32>
    %28 = vector.broadcast %cst_4 : f32 to vector<16x128xf32>
    %29 = arith.select %25, %27, %28 : vector<16x128xi1>, vector<16x128xf32>
    %30 = arith.addf %20, %29 : vector<16x128xf32>
    %c3_i32 = arith.constant 3 : i32
    %31 = vector.broadcast %c3_i32 : i32 to vector<16x1xi32>
    %32 = arith.cmpi eq, %0, %31 : vector<16x1xi32>
    %33 = vector.extract_strided_slice %1 {offsets = [3, 0], sizes = [1, 128], strides = [1, 1]} : vector<7x128xf32> to vector<1x128xf32>
    %cst_5 = arith.constant 0.000000e+00 : f32
    %34 = vector.shape_cast %32 : vector<16x1xi1> to vector<16x1xi1>
    %35 = vector.broadcast %34 : vector<16x1xi1> to vector<16x128xi1>
    %36 = vector.shape_cast %33 : vector<1x128xf32> to vector<1x128xf32>
    %37 = vector.broadcast %36 : vector<1x128xf32> to vector<16x128xf32>
    %38 = vector.broadcast %cst_5 : f32 to vector<16x128xf32>
    %39 = arith.select %35, %37, %38 : vector<16x128xi1>, vector<16x128xf32>
    %40 = arith.addf %30, %39 : vector<16x128xf32>
    %c4_i32 = arith.constant 4 : i32
    %41 = vector.broadcast %c4_i32 : i32 to vector<16x1xi32>
    %42 = arith.cmpi eq, %0, %41 : vector<16x1xi32>
    %43 = vector.extract_strided_slice %1 {offsets = [4, 0], sizes = [1, 128], strides = [1, 1]} : vector<7x128xf32> to vector<1x128xf32>
    %cst_6 = arith.constant 0.000000e+00 : f32
    %44 = vector.shape_cast %42 : vector<16x1xi1> to vector<16x1xi1>
    %45 = vector.broadcast %44 : vector<16x1xi1> to vector<16x128xi1>
    %46 = vector.shape_cast %43 : vector<1x128xf32> to vector<1x128xf32>
    %47 = vector.broadcast %46 : vector<1x128xf32> to vector<16x128xf32>
    %48 = vector.broadcast %cst_6 : f32 to vector<16x128xf32>
    %49 = arith.select %45, %47, %48 : vector<16x128xi1>, vector<16x128xf32>
    %50 = arith.addf %40, %49 : vector<16x128xf32>
    %c5_i32 = arith.constant 5 : i32
    %51 = vector.broadcast %c5_i32 : i32 to vector<16x1xi32>
    %52 = arith.cmpi eq, %0, %51 : vector<16x1xi32>
    %53 = vector.extract_strided_slice %1 {offsets = [5, 0], sizes = [1, 128], strides = [1, 1]} : vector<7x128xf32> to vector<1x128xf32>
    %cst_7 = arith.constant 0.000000e+00 : f32
    %54 = vector.shape_cast %52 : vector<16x1xi1> to vector<16x1xi1>
    %55 = vector.broadcast %54 : vector<16x1xi1> to vector<16x128xi1>
    %56 = vector.shape_cast %53 : vector<1x128xf32> to vector<1x128xf32>
    %57 = vector.broadcast %56 : vector<1x128xf32> to vector<16x128xf32>
    %58 = vector.broadcast %cst_7 : f32 to vector<16x128xf32>
    %59 = arith.select %55, %57, %58 : vector<16x128xi1>, vector<16x128xf32>
    %60 = arith.addf %50, %59 : vector<16x128xf32>
    %c6_i32 = arith.constant 6 : i32
    %61 = vector.broadcast %c6_i32 : i32 to vector<16x1xi32>
    %62 = arith.cmpi eq, %0, %61 : vector<16x1xi32>
    %63 = vector.extract_strided_slice %1 {offsets = [6, 0], sizes = [1, 128], strides = [1, 1]} : vector<7x128xf32> to vector<1x128xf32>
    %cst_8 = arith.constant 0.000000e+00 : f32
    %64 = vector.shape_cast %62 : vector<16x1xi1> to vector<16x1xi1>
    %65 = vector.broadcast %64 : vector<16x1xi1> to vector<16x128xi1>
    %66 = vector.shape_cast %63 : vector<1x128xf32> to vector<1x128xf32>
    %67 = vector.broadcast %66 : vector<1x128xf32> to vector<16x128xf32>
    %68 = vector.broadcast %cst_8 : f32 to vector<16x128xf32>
    %69 = arith.select %65, %67, %68 : vector<16x128xi1>, vector<16x128xf32>
    %70 = arith.addf %60, %69 : vector<16x128xf32>
    %c0_9 = arith.constant 0 : index
    %c0_10 = arith.constant 0 : index
    %71 = vector.load %arg3[%c0_9, %c0_10] : memref<16x128xf32, #tpu.memory_space<vmem>>, vector<16x128xf32>
    tpu.vector_store %arg3[%c0_9, %c0_10], %70 {strides = array<i32>} : memref<16x128xf32, #tpu.memory_space<vmem>>, vector<16x128xf32>,
    return
  }
  func.func @transform_0(%arg0: i32) -> (i32, i32) {
    %c0_i32 = arith.constant 0 : i32
    %c0_i32_0 = arith.constant 0 : i32
    return %arg0, %c0_i32 : i32, i32
  }
  func.func @transform_1(%arg0: i32) -> (i32, i32) {
    %c0_i32 = arith.constant 0 : i32
    %c0_i32_0 = arith.constant 0 : i32
    %c0_i32_1 = arith.constant 0 : i32
    return %c0_i32, %c0_i32_0 : i32, i32
  }
  func.func @transform_2(%arg0: i32) -> (i32, i32) {
    %c0_i32 = arith.constant 0 : i32
    %c0_i32_0 = arith.constant 0 : i32
    return %arg0, %c0_i32 : i32, i32
  }
}

</mosaic_0001>

<llo_original>
// kernel: _coupled_embedding_fwd.1
$region0: #{_coupled_embedding_fwd.1}
  #allocation0 [shape = 'u32[]', space=smem, size = 0x4, offset = 0x4, fixed_abs, tag = 'smem constant byte address 0x4 - core index']
  #allocation1 [shape = 'u32[72,128]{1,0:T(1,128)}', space=vmem, size = 0x9000, scoped, tag = 'internal scratch']
  %s0 = inlined_call_operand.vmem [shape: s32[16,1], index: 0, kind: input, shape index: {}]
  %s1 = inlined_call_operand.vmem [shape: f32[7,128], index: 1, kind: input, shape index: {}]
  %s2 = inlined_call_operand.hbm [shape: f32[16,128], index: 2, kind: output, shape index: {}]
  %s3 = sld [smem:[#allocation0]]
  $region18: #{_coupled_embedding_fwd.1} parent=0
    _
  %s5 = ssub.s32 1, %s3
  %s6 = scalar_select 0, %s5, %s3
  $region1: #{_coupled_embedding_fwd.1} parent=0
    #allocation2 [shape = 'u8[8192]{0}', space=vmem, size = 0x2000, scoped, tag = 'output window, operand 0, single buffered']
    #allocation3 [shape = 's32[1]{0}', space=sflag, size = 0x4, scoped, tag = 'scoped memory for _coupled_embedding_fwd.1']
    %7 = vsyncpa [#allocation3], 0
    // Predicated region
    $region2: #{_coupled_embedding_fwd.1} parent=1 // pred_check
      _
    $region3: #{_coupled_embedding_fwd.1} parent=1 // pred_check_branch
      %9 = sbr.rel (0) target = $region5
    $region4: #{_coupled_embedding_fwd.1} parent=1 // pred_region
      _
    $region5: #{_coupled_embedding_fwd.1} parent=1 // pred_fallthru
      _
    // Predicated region
    $region6: #{_coupled_embedding_fwd.1} parent=1 // pred_check
      _
    $region7: #{_coupled_embedding_fwd.1} parent=1 // pred_check_branch
      %11 = sbr.rel (0) target = $region9
    $region8: #{_coupled_embedding_fwd.1} parent=1 // pred_region
      _
    $region9: #{_coupled_embedding_fwd.1} parent=1 // pred_fallthru
      _
    %v12 = vld [vmem:[%s0] sm:$0xff]
    %v13 = vld [vmem:[%s0 + $0x8] sm:$0xff]
    %v14 = vld [vmem:[%s1] sm:$0x7f]
    %vm15 = vcmp.eq.s32.totalorder %v12, 0
    %vm16 = vcmp.eq.s32.totalorder %v13, 0
    %v17 = vsel %vm15, 1, 0
    %v18 = vsel %vm16, 1, 0
    %19 = vset.pattern.permute.xlu0 0
    %20 = vperm.xlu0 %19, %v17
    %v21 = vpop.permute.xlu0 %20
    %22 = vset.pattern.permute.xlu0 0
    %23 = vperm.xlu0 %22, %v18
    %v24 = vpop.permute.xlu0 %23
    %vm25 = vcmp.eq.s32.totalorder %v21, 1
    %vm26 = vcmp.eq.s32.totalorder %v24, 1
    %v27 = vperm.slane %v14, 0
    %v28 = vsel %vm25, %v27, 0.0
    %v29 = vsel %vm26, %v27, 0.0
    %vm30 = vcmp.eq.s32.totalorder %v12, 1
    %vm31 = vcmp.eq.s32.totalorder %v13, 1
    %v32 = vsel %vm30, 1, 0
    %v33 = vsel %vm31, 1, 0
    %34 = vset.pattern.permute.xlu0 0
    %35 = vperm.xlu0 %34, %v32
    %v36 = vpop.permute.xlu0 %35
    %37 = vset.pattern.permute.xlu0 0
    %38 = vperm.xlu0 %37, %v33
    %v39 = vpop.permute.xlu0 %38
    %vm40 = vcmp.eq.s32.totalorder %v36, 1
    %vm41 = vcmp.eq.s32.totalorder %v39, 1
    %v42 = vperm.slane %v14, 1
    %v43 = vsel %vm40, %v42, 0.0
    %v44 = vsel %vm41, %v42, 0.0
    %v45 = vadd.f32 %v28, %v43
    %v46 = vadd.f32 %v29, %v44
    %vm47 = vcmp.eq.s32.totalorder %v12, 2
    %vm48 = vcmp.eq.s32.totalorder %v13, 2
    %v49 = vsel %vm47, 1, 0
    %v50 = vsel %vm48, 1, 0
    %51 = vset.pattern.permute.xlu0 0
    %52 = vperm.xlu0 %51, %v49
    %v53 = vpop.permute.xlu0 %52
    %54 = vset.pattern.permute.xlu0 0
    %55 = vperm.xlu0 %54, %v50
    %v56 = vpop.permute.xlu0 %55
    %vm57 = vcmp.eq.s32.totalorder %v53, 1
    %vm58 = vcmp.eq.s32.totalorder %v56, 1
    %v59 = vperm.slane %v14, 2
    %v60 = vsel %vm57, %v59, 0.0
    %v61 = vsel %vm58, %v59, 0.0
    %v62 = vadd.f32 %v45, %v60
    %v63 = vadd.f32 %v46, %v61
    %vm64 = vcmp.eq.s32.totalorder %v12, 3
    %vm65 = vcmp.eq.s32.totalorder %v13, 3
    %v66 = vsel %vm64, 1, 0
    %v67 = vsel %vm65, 1, 0
    %68 = vset.pattern.permute.xlu0 0
    %69 = vperm.xlu0 %68, %v66
    %v70 = vpop.permute.xlu0 %69
    %71 = vset.pattern.permute.xlu0 0
    %72 = vperm.xlu0 %71, %v67
    %v73 = vpop.permute.xlu0 %72
    %vm74 = vcmp.eq.s32.totalorder %v70, 1
    %vm75 = vcmp.eq.s32.totalorder %v73, 1
    %v76 = vperm.slane %v14, 3
    %v77 = vsel %vm74, %v76, 0.0
    %v78 = vsel %vm75, %v76, 0.0
    %v79 = vadd.f32 %v62, %v77
    %v80 = vadd.f32 %v63, %v78
    %vm81 = vcmp.eq.s32.totalorder %v12, 4
    %vm82 = vcmp.eq.s32.totalorder %v13, 4
    %v83 = vsel %vm81, 1, 0
    %v84 = vsel %vm82, 1, 0
    %85 = vset.pattern.permute.xlu0 0
    %86 = vperm.xlu0 %85, %v83
    %v87 = vpop.permute.xlu0 %86
    %88 = vset.pattern.permute.xlu0 0
    %89 = vperm.xlu0 %88, %v84
    %v90 = vpop.permute.xlu0 %89
    %vm91 = vcmp.eq.s32.totalorder %v87, 1
    %vm92 = vcmp.eq.s32.totalorder %v90, 1
    %v93 = vperm.slane %v14, 4
    %v94 = vsel %vm91, %v93, 0.0
    %v95 = vsel %vm92, %v93, 0.0
    %v96 = vadd.f32 %v79, %v94
    %v97 = vadd.f32 %v80, %v95
    %vm98 = vcmp.eq.s32.totalorder %v12, 5
    %vm99 = vcmp.eq.s32.totalorder %v13, 5
    %v100 = vsel %vm98, 1, 0
    %v101 = vsel %vm99, 1, 0
    %102 = vset.pattern.permute.xlu0 0
    %103 = vperm.xlu0 %102, %v100
    %v104 = vpop.permute.xlu0 %103
    %105 = vset.pattern.permute.xlu0 0
    %106 = vperm.xlu0 %105, %v101
    %v107 = vpop.permute.xlu0 %106
    %vm108 = vcmp.eq.s32.totalorder %v104, 1
    %vm109 = vcmp.eq.s32.totalorder %v107, 1
    %v110 = vperm.slane %v14, 5
    %v111 = vsel %vm108, %v110, 0.0
    %v112 = vsel %vm109, %v110, 0.0
    %v113 = vadd.f32 %v96, %v111
    %v114 = vadd.f32 %v97, %v112
    %vm115 = vcmp.eq.s32.totalorder %v12, 6
    %vm116 = vcmp.eq.s32.totalorder %v13, 6
    %v117 = vsel %vm115, 1, 0
    %v118 = vsel %vm116, 1, 0
    %119 = vset.pattern.permute.xlu0 0
    %120 = vperm.xlu0 %119, %v117
    %v121 = vpop.permute.xlu0 %120
    %122 = vset.pattern.permute.xlu0 0
    %123 = vperm.xlu0 %122, %v118
    %v124 = vpop.permute.xlu0 %123
    %vm125 = vcmp.eq.s32.totalorder %v121, 1
    %vm126 = vcmp.eq.s32.totalorder %v124, 1
    %v127 = vperm.slane %v14, 6
    %v128 = vsel %vm125, %v127, 0.0
    %v129 = vsel %vm126, %v127, 0.0
    %v130 = vadd.f32 %v113, %v128
    %v131 = vadd.f32 %v114, %v129
    %132 = vst [vmem:[#allocation2] sm:$0xff] %v130
    %133 = vst [vmem:[#allocation2 + $0x8] sm:$0xff] %v131
    // Predicated region
    $region10: #{_coupled_embedding_fwd.1} parent=1 // pred_check
      _
    $region11: #{_coupled_embedding_fwd.1} parent=1 // pred_check_branch
      %135 = sbr.rel (0) target = $region13
    $region12: #{_coupled_embedding_fwd.1} parent=1 // pred_region
      %137 = vsyncadd [#allocation3], 0
      %s138 = sshll.u32 [#allocation2], 4
      %s139 = int_to_ptr.vmem [resolvable:$true] %s138
      %s140 = sshll.u32 %s2, 4
      %s141 = int_to_ptr.hbm [resolvable:$true] %s140
      %146 = dma.vmem_to_hbm [thread:$0]  %s139, 256, %s141, [#allocation3], 128, 128, 8
    $region13: #{_coupled_embedding_fwd.1} parent=1 // pred_fallthru
      _
    // Predicated region
    $region14: #{_coupled_embedding_fwd.1} parent=1 // pred_check
      _
    $region15: #{_coupled_embedding_fwd.1} parent=1 // pred_check_branch
      %148 = sbr.rel (0) target = $region17
    $region16: #{_coupled_embedding_fwd.1} parent=1 // pred_region
      %150 = dma.done [#allocation3], 256
    $region17: #{_coupled_embedding_fwd.1} parent=1 // pred_fallthru
      _
    %151 = vsyncpa [#allocation3], 1

</llo_original>
